<compile_context>
chip_gen: v6e
topology: v6e:2x2x1
jax: 0.10.0
libtpu: 0.0.40
codegen_flags: <defaults>
</compile_context>

<pallas_src>
import functools

import jax
import jax.numpy as jnp
from jax import lax
from jax.experimental import pallas as pl
from jax.experimental.pallas import tpu as pltpu


_LANES = 1024                       # lane-dense last dim (multiple of 128)
_MAX_TILE_BYTES = 4 * 1024 * 1024   # per-input block target (16 MiB in flight, fits v7x)
_MIN_KERNEL_ELEMS = 128 * 1024      # below this, plain XLA beats a kernel launch
_CHUNK_TILE_THRESHOLD = 8           # >= this many tiles -> 2 "parallel" chunks (v7x 2-TC)


def _round_up(x, m):
    return (x + m - 1) // m * m


def _sublane_group(dtype):
    """Rows per packed-vreg group for this dtype (8 f32, 16 bf16, 32 int8)."""
    return 8 * max(1, 4 // jnp.dtype(dtype).itemsize)


def _fold_tile(pred_ref, target_ref, acc_ref, n_groups, gh):
    """Accumulate `n_groups` (static) groups of `gh` rows into the (2,8,LANES) acc."""
    if n_groups <= 0:
        return

    def group_fn(g, acc_i, acc_t):
        start = g * gh
        if not isinstance(start, int):
            start = pl.multiple_of(start, gh)
        p = pred_ref[pl.ds(start, gh), :].astype(jnp.float32)
        t = target_ref[pl.ds(start, gh), :].astype(jnp.float32)
        prod = p * t
        both = p + t
        for h in range(gh // 8):        # fold gh-row group into the 8-row accumulators
            acc_i = acc_i + prod[h * 8:(h + 1) * 8]
            acc_t = acc_t + both[h * 8:(h + 1) * 8]
        return acc_i, acc_t

    acc_i = acc_ref[0]
    acc_t = acc_ref[1]
    if n_groups <= 16:
        for g in range(n_groups):       # short static loops: full unroll is cheap
            acc_i, acc_t = group_fn(g, acc_i, acc_t)
    else:
        unroll = (8 if n_groups % 8 == 0 else
                  4 if n_groups % 4 == 0 else
                  2 if n_groups % 2 == 0 else 1)

        def body(g, carry):
            return group_fn(g, *carry)

        acc_i, acc_t = lax.fori_loop(0, n_groups, body, (acc_i, acc_t), unroll=unroll)

    acc_ref[0] = acc_i
    acc_ref[1] = acc_t


def _dice_partial_kernel(pred_ref, target_ref, out_ref, acc_ref, *,
                         gh, tiles_per_chunk, grid_tiles, n_tiles,
                         groups_full, groups_last, lanes):
    """Per-chunk partial sums of (pred*target) and (pred+target).

    pred_ref / target_ref: (tile_rows, lanes) input tile.
    acc_ref: (2, 8, lanes) f32 VMEM scratch, persistent across the inner
    ("arbitrary") grid axis; slot 0 = intersection, slot 1 = pred + target.
    out_ref: (1, 2, 8, 128) per-chunk output, written once at chunk end.
    """
    c = pl.program_id(0)
    i = pl.program_id(1)

    @pl.when(i == 0)
    def _init():
        acc_ref[...] = jnp.zeros(acc_ref.shape, jnp.float32)

    g_tile = c * tiles_per_chunk + i     # global tile index

    if grid_tiles == n_tiles and groups_last == groups_full:
        # Every grid step maps to a full tile: single static path, no branches.
        _fold_tile(pred_ref, target_ref, acc_ref, groups_full, gh)
    else:
        if n_tiles > 1:
            @pl.when(g_tile < n_tiles - 1)
            def _full():
                _fold_tile(pred_ref, target_ref, acc_ref, groups_full, gh)

        @pl.when(g_tile == n_tiles - 1)
        def _last():
            _fold_tile(pred_ref, target_ref, acc_ref, groups_last, gh)
        # g_tile >= n_tiles (possible only when grid_tiles > n_tiles): nothing to do.

    @pl.when(i == tiles_per_chunk - 1)
    def _finalize():
        a = acc_ref[...]                 # (2, 8, lanes) f32
        r = a[:, :, 0:128]
        for k in range(1, lanes // 128): # lane-fold to (2, 8, 128): cheap, once per chunk
            r = r + a[:, :, k * 128:(k + 1) * 128]
        out_ref[0] = r


def dice_loss(pred, target, smooth=1.0, *, min_kernel_elems=_MIN_KERNEL_ELEMS):
    """Pallas implementation of DiceLoss.forward. pred/target: same shape."""
    assert pred.shape == target.shape
    total = int(pred.size)
    smooth = jnp.float32(smooth)

    # Tiny inputs: layout plumbing + a kernel launch cost more than they save.
    if total < min_kernel_elems:
        m1 = pred.reshape(-1).astype(jnp.float32)
        m2 = target.reshape(-1).astype(jnp.float32)
        inter = jnp.sum(m1 * m2)
        tot = jnp.sum(m1) + jnp.sum(m2)
        return 1.0 - (2.0 * inter + smooth) / (tot + smooth)

    gh = max(_sublane_group(pred.dtype), _sublane_group(target.dtype))
    itemsize = max(jnp.dtype(pred.dtype).itemsize, jnp.dtype(target.dtype).itemsize)

    # Lane/sublane-dense layout (rows8, _LANES) with rows8 a multiple of gh.
    # Zero-padding (exact for all three sums) is < gh*_LANES elements and is
    # skipped completely when the element count is already aligned.
    rows = max(pl.cdiv(total, _LANES), 1)
    rows8 = _round_up(rows, gh)
    padded_total = rows8 * _LANES

    max_tile_rows = max(gh, _MAX_TILE_BYTES // (_LANES * itemsize) // gh * gh)
    tile_rows = min(max_tile_rows, rows8)
    n_tiles = pl.cdiv(rows8, tile_rows)

    n_chunks = 2 if n_tiles >= _CHUNK_TILE_THRESHOLD else 1
    tiles_per_chunk = pl.cdiv(n_tiles, n_chunks)
    grid_tiles = n_chunks * tiles_per_chunk

    groups_full = tile_rows // gh
    groups_last = (rows8 - (n_tiles - 1) * tile_rows) // gh

    def _to_tiles(x):
        flat = x.reshape(-1)
        if padded_total != total:
            flat = jnp.pad(flat, (0, padded_total - total))
        return flat.reshape(rows8, _LANES)

    m1 = _to_tiles(pred)
    m2 = _to_tiles(target)

    if grid_tiles == n_tiles:
        def in_index_map(c, i):
            return (c * tiles_per_chunk + i, 0)
    else:
        # Clamp the (at most one) fully-out-of-range grid step onto the last
        # real tile; the kernel skips its compute entirely.
        def in_index_map(c, i):
            return (jnp.minimum(c * tiles_per_chunk + i, n_tiles - 1), 0)

    in_spec = pl.BlockSpec((tile_rows, _LANES), in_index_map)
    out_spec = pl.BlockSpec((1, 2, 8, 128), lambda c, i: (c, 0, 0, 0))

    kernel = functools.partial(
        _dice_partial_kernel, gh=gh, tiles_per_chunk=tiles_per_chunk,
        grid_tiles=grid_tiles, n_tiles=n_tiles,
        groups_full=groups_full, groups_last=groups_last, lanes=_LANES)

    partials = pl.pallas_call(
        kernel,
        out_shape=jax.ShapeDtypeStruct((n_chunks, 2, 8, 128), jnp.float32),
        grid_spec=pltpu.PrefetchScalarGridSpec(
            num_scalar_prefetch=0,
            grid=(n_chunks, tiles_per_chunk),
            in_specs=[in_spec, in_spec],
            out_specs=out_spec,
            scratch_shapes=[pltpu.VMEM((2, 8, _LANES), jnp.float32)],
        ),
        compiler_params=pltpu.CompilerParams(
            dimension_semantics=("parallel", "arbitrary"),
            vmem_limit_bytes=40 * 1024 * 1024,
        ),
        cost_estimate=pl.CostEstimate(
            flops=4 * padded_total,
            transcendentals=0,
            bytes_accessed=(jnp.dtype(pred.dtype).itemsize
                            + jnp.dtype(target.dtype).itemsize) * padded_total,
        ),
    )(m1, m2)

    # Final (tiny) reduce + scalar combine on (n_chunks, 2, 8, 128) partials.
    intersection = jnp.sum(partials[:, 0])
    total_sum = jnp.sum(partials[:, 1])          # == sum(pred) + sum(target)
    return 1.0 - (2.0 * intersection + smooth) / (total_sum + smooth)


def dice_loss_ref(pred, target, smooth=1.0):
    n = pred.shape[0]
    m1 = pred.reshape(n, -1).astype(jnp.float32)
    m2 = target.reshape(n, -1).astype(jnp.float32)
    inter = jnp.sum(m1 * m2)
    return 1.0 - (2.0 * inter + smooth) / (jnp.sum(m1) + jnp.sum(m2) + smooth)


if __name__ == "__main__":
    key = jax.random.PRNGKey(0)
    kp, kt, kp2, kt2 = jax.random.split(key, 4)

    # Small NCHW input (the module's natural scale): uses the XLA fallback path.
    pred_s = jax.nn.sigmoid(jax.random.normal(kp, (2, 4, 16, 16), dtype=jnp.float32))
    targ_s = (jax.random.uniform(kt, (2, 4, 16, 16)) > 0.5).astype(jnp.float32)
    ref_s = jax.block_until_ready(dice_loss_ref(pred_s, targ_s, smooth=1.0))

    out_fallback = jax.block_until_ready(dice_loss(pred_s, targ_s, smooth=1.0))
    assert jnp.allclose(out_fallback, ref_s, rtol=1e-4, atol=1e-5), (out_fallback, ref_s)

    # Same small input forced through the Pallas kernel (single (8, 1024) tile).
    out_kernel_small = jax.block_until_ready(
        dice_loss(pred_s, targ_s, smooth=1.0, min_kernel_elems=0))
    assert jnp.allclose(out_kernel_small, ref_s, rtol=1e-4, atol=1e-5), (out_kernel_small, ref_s)

    # Larger input through the Pallas path: 1200 rows -> 2 tiles, ragged last tile.
    shape_l = (2, 4, 512, 300)   # 1,228,800 elements (exactly 1200 lane-rows, no pad)
    pred_l = jax.nn.sigmoid(jax.random.normal(kp2, shape_l, dtype=jnp.float32))
    targ_l = (jax.random.uniform(kt2, shape_l) > 0.5).astype(jnp.float32)
    ref_l = jax.block_until_ready(dice_loss_ref(pred_l, targ_l, smooth=1.0))
    out_kernel_large = jax.block_until_ready(dice_loss(pred_l, targ_l, smooth=1.0))
    assert jnp.allclose(out_kernel_large, ref_l, rtol=1e-4, atol=1e-5), (out_kernel_large, ref_l)

    print("KERNEL_OK")
</pallas_src>

<mosaic_0001>
module attributes {stable_mosaic.version = 11 : i64} {
  func.func @_dice_partial_kernel(%arg0: i32, %arg1: i32, %arg2: memref<8x1024xf32, #tpu.memory_space<vmem>>, %arg3: memref<8x1024xf32, #tpu.memory_space<vmem>>, %arg4: memref<1x2x8x128xf32, #tpu.memory_space<vmem>>, %arg5: memref<2x8x1024xf32, #tpu.memory_space<vmem>>) attributes {dimension_semantics = [#tpu.dimension_semantics<parallel>, #tpu.dimension_semantics<arbitrary>], iteration_bounds = array<i64: 1, 1>, scalar_prefetch = 0 : i64, scratch_operands = 1 : i64, tpu.core_type = #tpu.core_type<tc>, window_params = [{transform_indices = @transform_0, window_bounds = array<i64: 8, 1024>}, {transform_indices = @transform_1, window_bounds = array<i64: 8, 1024>}, {transform_indices = @transform_2, window_bounds = array<i64: 1, 2, 8, 128>}]} {
    %c0_i32 = arith.constant 0 : i32
    %0 = arith.cmpi eq, %arg1, %c0_i32 : i32
    %1 = arith.extui %0 : i1 to i32
    %c0_i32_0 = arith.constant 0 : i32
    %2 = arith.cmpi ne, %1, %c0_i32_0 : i32
    scf.if %2 {
      %cst = arith.constant 0.000000e+00 : f32
      %22 = vector.broadcast %cst : f32 to vector<2x8x1024xf32>
      %c0_17 = arith.constant 0 : index
      %c0_18 = arith.constant 0 : index
      %c0_19 = arith.constant 0 : index
      %23 = vector.load %arg5[%c0_17, %c0_18, %c0_19] : memref<2x8x1024xf32, #tpu.memory_space<vmem>>, vector<2x8x1024xf32>
      tpu.vector_store %arg5[%c0_17, %c0_18, %c0_19], %22 {strides = array<i32>} : memref<2x8x1024xf32, #tpu.memory_space<vmem>>, vector<2x8x1024xf32>,
    } else {
    }
    %c0 = arith.constant 0 : index
    %c0_1 = arith.constant 0 : index
    %c0_2 = arith.constant 0 : index
    %3 = vector.load %arg5[%c0, %c0_1, %c0_2] : memref<2x8x1024xf32, #tpu.memory_space<vmem>>, vector<1x8x1024xf32>
    %4 = vector.shape_cast %3 : vector<1x8x1024xf32> to vector<8x1024xf32>
    %c1 = arith.constant 1 : index
    %c0_3 = arith.constant 0 : index
    %c0_4 = arith.constant 0 : index
    %5 = vector.load %arg5[%c1, %c0_3, %c0_4] : memref<2x8x1024xf32, #tpu.memory_space<vmem>>, vector<1x8x1024xf32>
    %6 = vector.shape_cast %5 : vector<1x8x1024xf32> to vector<8x1024xf32>
    %c0_5 = arith.constant 0 : index
    %c0_6 = arith.constant 0 : index
    %7 = vector.load %arg2[%c0_5, %c0_6] : memref<8x1024xf32, #tpu.memory_space<vmem>>, vector<8x1024xf32>
    %c0_7 = arith.constant 0 : index
    %c0_8 = arith.constant 0 : index
    %8 = vector.load %arg3[%c0_7, %c0_8] : memref<8x1024xf32, #tpu.memory_space<vmem>>, vector<8x1024xf32>
    %9 = arith.mulf %7, %8 : vector<8x1024xf32>
    %10 = arith.addf %7, %8 : vector<8x1024xf32>
    %11 = arith.addf %4, %9 : vector<8x1024xf32>
    %12 = arith.addf %6, %10 : vector<8x1024xf32>
    %c0_9 = arith.constant 0 : index
    %c0_10 = arith.constant 0 : index
    %c0_11 = arith.constant 0 : index
    %13 = vector.load %arg5[%c0_9, %c0_10, %c0_11] : memref<2x8x1024xf32, #tpu.memory_space<vmem>>, vector<1x8x1024xf32>
    %14 = vector.shape_cast %13 : vector<1x8x1024xf32> to vector<8x1024xf32>
    %15 = vector.shape_cast %11 : vector<8x1024xf32> to vector<1x8x1024xf32>
    tpu.vector_store %arg5[%c0_9, %c0_10, %c0_11], %15 {strides = array<i32>} : memref<2x8x1024xf32, #tpu.memory_space<vmem>>, vector<1x8x1024xf32>,
    %c1_12 = arith.constant 1 : index
    %c0_13 = arith.constant 0 : index
    %c0_14 = arith.constant 0 : index
    %16 = vector.load %arg5[%c1_12, %c0_13, %c0_14] : memref<2x8x1024xf32, #tpu.memory_space<vmem>>, vector<1x8x1024xf32>
    %17 = vector.shape_cast %16 : vector<1x8x1024xf32> to vector<8x1024xf32>
    %18 = vector.shape_cast %12 : vector<8x1024xf32> to vector<1x8x1024xf32>
    tpu.vector_store %arg5[%c1_12, %c0_13, %c0_14], %18 {strides = array<i32>} : memref<2x8x1024xf32, #tpu.memory_space<vmem>>, vector<1x8x1024xf32>,
    %c0_i32_15 = arith.constant 0 : i32
    %19 = arith.cmpi eq, %arg1, %c0_i32_15 : i32
    %20 = arith.extui %19 : i1 to i32
    %c0_i32_16 = arith.constant 0 : i32
    %21 = arith.cmpi ne, %20, %c0_i32_16 : i32
    scf.if %21 {
      %c0_17 = arith.constant 0 : index
      %c0_18 = arith.constant 0 : index
      %c0_19 = arith.constant 0 : index
      %22 = vector.load %arg5[%c0_17, %c0_18, %c0_19] : memref<2x8x1024xf32, #tpu.memory_space<vmem>>, vector<2x8x1024xf32>
      %23 = vector.extract_strided_slice %22 {offsets = [0, 0, 0], sizes = [2, 8, 128], strides = [1, 1, 1]} : vector<2x8x1024xf32> to vector<2x8x128xf32>
      %24 = vector.extract_strided_slice %22 {offsets = [0, 0, 128], sizes = [2, 8, 128], strides = [1, 1, 1]} : vector<2x8x1024xf32> to vector<2x8x128xf32>
      %25 = arith.addf %23, %24 : vector<2x8x128xf32>
      %26 = vector.extract_strided_slice %22 {offsets = [0, 0, 256], sizes = [2, 8, 128], strides = [1, 1, 1]} : vector<2x8x1024xf32> to vector<2x8x128xf32>
      %27 = arith.addf %25, %26 : vector<2x8x128xf32>
      %28 = vector.extract_strided_slice %22 {offsets = [0, 0, 384], sizes = [2, 8, 128], strides = [1, 1, 1]} : vector<2x8x1024xf32> to vector<2x8x128xf32>
      %29 = arith.addf %27, %28 : vector<2x8x128xf32>
      %30 = vector.extract_strided_slice %22 {offsets = [0, 0, 512], sizes = [2, 8, 128], strides = [1, 1, 1]} : vector<2x8x1024xf32> to vector<2x8x128xf32>
      %31 = arith.addf %29, %30 : vector<2x8x128xf32>
      %32 = vector.extract_strided_slice %22 {offsets = [0, 0, 640], sizes = [2, 8, 128], strides = [1, 1, 1]} : vector<2x8x1024xf32> to vector<2x8x128xf32>
      %33 = arith.addf %31, %32 : vector<2x8x128xf32>
      %34 = vector.extract_strided_slice %22 {offsets = [0, 0, 768], sizes = [2, 8, 128], strides = [1, 1, 1]} : vector<2x8x1024xf32> to vector<2x8x128xf32>
      %35 = arith.addf %33, %34 : vector<2x8x128xf32>
      %36 = vector.extract_strided_slice %22 {offsets = [0, 0, 896], sizes = [2, 8, 128], strides = [1, 1, 1]} : vector<2x8x1024xf32> to vector<2x8x128xf32>
      %37 = arith.addf %35, %36 : vector<2x8x128xf32>
      %c0_20 = arith.constant 0 : index
      %c0_21 = arith.constant 0 : index
      %c0_22 = arith.constant 0 : index
      %c0_23 = arith.constant 0 : index
      %38 = vector.load %arg4[%c0_20, %c0_21, %c0_22, %c0_23] : memref<1x2x8x128xf32, #tpu.memory_space<vmem>>, vector<1x2x8x128xf32>
      %39 = vector.shape_cast %38 : vector<1x2x8x128xf32> to vector<2x8x128xf32>
      %40 = vector.shape_cast %37 : vector<2x8x128xf32> to vector<1x2x8x128xf32>
      tpu.vector_store %arg4[%c0_20, %c0_21, %c0_22, %c0_23], %40 {strides = array<i32>} : memref<1x2x8x128xf32, #tpu.memory_space<vmem>>, vector<1x2x8x128xf32>,
    } else {
    }
    return
  }
  func.func @transform_0(%arg0: i32, %arg1: i32) -> (i32, i32) {
    %c1_i32 = arith.constant 1 : i32
    %0 = arith.muli %arg0, %c1_i32 : i32
    %1 = arith.addi %0, %arg1 : i32
    %c0_i32 = arith.constant 0 : i32
    %c0_i32_0 = arith.constant 0 : i32
    return %1, %c0_i32 : i32, i32
  }
  func.func @transform_1(%arg0: i32, %arg1: i32) -> (i32, i32) {
    %c1_i32 = arith.constant 1 : i32
    %0 = arith.muli %arg0, %c1_i32 : i32
    %1 = arith.addi %0, %arg1 : i32
    %c0_i32 = arith.constant 0 : i32
    %c0_i32_0 = arith.constant 0 : i32
    return %1, %c0_i32 : i32, i32
  }
  func.func @transform_2(%arg0: i32, %arg1: i32) -> (i32, i32, i32, i32) {
    %c0_i32 = arith.constant 0 : i32
    %c0_i32_0 = arith.constant 0 : i32
    %c0_i32_1 = arith.constant 0 : i32
    %c0_i32_2 = arith.constant 0 : i32
    return %arg0, %c0_i32, %c0_i32_0, %c0_i32_1 : i32, i32, i32, i32
  }
}

</mosaic_0001>

<llo_original>
// kernel: tpu_custom_call.1
$region0: #{tpu_custom_call.1}
  #allocation0 [shape = 'u32[]', space=smem, size = 0x4, offset = 0x4, fixed_abs, tag = 'smem constant byte address 0x4 - core index']
  #allocation1 [shape = 'u32[144,128]{1,0:T(1,128)}', space=vmem, size = 0x12000, scoped, tag = 'internal scratch']
  #allocation2 [shape = 'f32[2,8,1024]{2,1,0:T(8,128)}', space=vmem, size = 0x10000, scoped, tag = 'scratch operand']
  %s0 = inlined_call_operand.hbm [shape: f32[8,1024], index: 0, kind: input, shape index: {}]
  %s1 = inlined_call_operand.hbm [shape: f32[8,1024], index: 1, kind: input, shape index: {}]
  %s2 = inlined_call_operand.hbm [shape: f32[1,2,8,128], index: 2, kind: output, shape index: {}]
  %s3 = sld [smem:[#allocation0]]
  $region34: #{tpu_custom_call.1} parent=0
    _
  %s5 = ssub.s32 1, %s3
  %s6 = scalar_select 0, %s5, %s3
  $region1: #{tpu_custom_call.1} parent=0
    #allocation3 [shape = 'u8[32768]{0}', space=vmem, size = 0x8000, scoped, tag = 'input window, operand 0, single buffered']
    #allocation4 [shape = 's32[1]{0}', space=sflag, size = 0x4, scoped, tag = 'scoped memory for tpu_custom_call.1']
    #allocation5 [shape = 's32[1]{0}', space=sflag, size = 0x4, scoped, tag = 'scoped memory for tpu_custom_call.1']
    #allocation6 [shape = 'u8[32768]{0}', space=vmem, size = 0x8000, scoped, tag = 'input window, operand 1, single buffered']
    #allocation7 [shape = 's32[1]{0}', space=sflag, size = 0x4, scoped, tag = 'scoped memory for tpu_custom_call.1']
    #allocation8 [shape = 'u8[8192]{0}', space=vmem, size = 0x2000, scoped, tag = 'output window, operand 0, single buffered']
    %7 = vsyncpa [#allocation4], 0
    %8 = vsyncpa [#allocation7], 0
    %9 = vsyncpa [#allocation5], 0
    // Predicated region
    $region2: #{tpu_custom_call.1} parent=1 // pred_check
      _
    $region3: #{tpu_custom_call.1} parent=1 // pred_check_branch
      %11 = sbr.rel (0) target = $region5
    $region4: #{tpu_custom_call.1} parent=1 // pred_region
      %s12 = sadd.s32 0, 0
      %s14 = ssub.s32 1024, 1024
      %15 = vsyncadd [#allocation4], %s14
      %s16 = smul.addr %s12, 8
      %s17 = smul.addr %s16, 128
      %s18 = scalar_lea.hbm %s0, %s17
      %s20 = sshll.u32 [#allocation3], 4
      %s21 = int_to_ptr.vmem [resolvable:$true] %s20
      %23 = dma.hbm_to_vmem [thread:$0]  %s18, 1024, %s21, [#allocation4]
    $region5: #{tpu_custom_call.1} parent=1 // pred_fallthru
      _
    // Predicated region
    $region6: #{tpu_custom_call.1} parent=1 // pred_check
      _
    $region7: #{tpu_custom_call.1} parent=1 // pred_check_branch
      %25 = sbr.rel (0) target = $region9
    $region8: #{tpu_custom_call.1} parent=1 // pred_region
      %s26 = sadd.s32 0, 0
      %s28 = ssub.s32 1024, 1024
      %29 = vsyncadd [#allocation7], %s28
      %s30 = smul.addr %s26, 8
      %s31 = smul.addr %s30, 128
      %s32 = scalar_lea.hbm %s1, %s31
      %s34 = sshll.u32 [#allocation6], 4
      %s35 = int_to_ptr.vmem [resolvable:$true] %s34
      %37 = dma.hbm_to_vmem [thread:$0]  %s32, 1024, %s35, [#allocation7]
    $region9: #{tpu_custom_call.1} parent=1 // pred_fallthru
      _
    // Predicated region
    $region10: #{tpu_custom_call.1} parent=1 // pred_check
      _
    $region11: #{tpu_custom_call.1} parent=1 // pred_check_branch
      %39 = sbr.rel (0) target = $region13
    $region12: #{tpu_custom_call.1} parent=1 // pred_region
      %40 = dma.done [#allocation4], 1024
    $region13: #{tpu_custom_call.1} parent=1 // pred_fallthru
      _
    // Predicated region
    $region14: #{tpu_custom_call.1} parent=1 // pred_check
      _
    $region15: #{tpu_custom_call.1} parent=1 // pred_check_branch
      %42 = sbr.rel (0) target = $region17
    $region16: #{tpu_custom_call.1} parent=1 // pred_region
      %43 = dma.done [#allocation7], 1024
    $region17: #{tpu_custom_call.1} parent=1 // pred_fallthru
      _
    %s44 = sadd.s32 0, 0
    %s45 = sadd.s32 0, 0
    %p46 = scmp.eq.s32.totalorder 0, 0
    // Predicated region
    $region18: #{tpu_custom_call.1} parent=1 // pred_check
      %p47 = pneg %p46
    $region19: #{tpu_custom_call.1} parent=1 // pred_check_branch
      %49 = sbr.rel (%p47) target = $region21
    $region20: #{tpu_custom_call.1} parent=1 // pred_region
      %50 = vst [vmem:[#allocation2] sm:$0xff] 0.0
      %51 = vst [vmem:[#allocation2 + $0x8] sm:$0xff] 0.0
      %52 = vst [vmem:[#allocation2 + $0x10] sm:$0xff] 0.0
      %53 = vst [vmem:[#allocation2 + $0x18] sm:$0xff] 0.0
      %54 = vst [vmem:[#allocation2 + $0x20] sm:$0xff] 0.0
      %55 = vst [vmem:[#allocation2 + $0x28] sm:$0xff] 0.0
      %56 = vst [vmem:[#allocation2 + $0x30] sm:$0xff] 0.0
      %57 = vst [vmem:[#allocation2 + $0x38] sm:$0xff] 0.0
      %58 = vst [vmem:[#allocation2 + $0x40] sm:$0xff] 0.0
      %59 = vst [vmem:[#allocation2 + $0x48] sm:$0xff] 0.0
      %60 = vst [vmem:[#allocation2 + $0x50] sm:$0xff] 0.0
      %61 = vst [vmem:[#allocation2 + $0x58] sm:$0xff] 0.0
      %62 = vst [vmem:[#allocation2 + $0x60] sm:$0xff] 0.0
      %63 = vst [vmem:[#allocation2 + $0x68] sm:$0xff] 0.0
      %64 = vst [vmem:[#allocation2 + $0x70] sm:$0xff] 0.0
      %65 = vst [vmem:[#allocation2 + $0x78] sm:$0xff] 0.0
    $region21: #{tpu_custom_call.1} parent=1 // pred_fallthru
      _
    %v66 = vld [vmem:[#allocation2] sm:$0xff]
    %v67 = vld [vmem:[#allocation2 + $0x8] sm:$0xff]
    %v68 = vld [vmem:[#allocation2 + $0x10] sm:$0xff]
    %v69 = vld [vmem:[#allocation2 + $0x18] sm:$0xff]
    %v70 = vld [vmem:[#allocation2 + $0x20] sm:$0xff]
    %v71 = vld [vmem:[#allocation2 + $0x28] sm:$0xff]
    %v72 = vld [vmem:[#allocation2 + $0x30] sm:$0xff]
    %v73 = vld [vmem:[#allocation2 + $0x38] sm:$0xff]
    %s74 = scalar_lea.vmem [#allocation2], 64
    %v75 = vld [vmem:[%s74] sm:$0xff]
    %v76 = vld [vmem:[%s74 + $0x8] sm:$0xff]
    %v77 = vld [vmem:[%s74 + $0x10] sm:$0xff]
    %v78 = vld [vmem:[%s74 + $0x18] sm:$0xff]
    %v79 = vld [vmem:[%s74 + $0x20] sm:$0xff]
    %v80 = vld [vmem:[%s74 + $0x28] sm:$0xff]
    %v81 = vld [vmem:[%s74 + $0x30] sm:$0xff]
    %v82 = vld [vmem:[%s74 + $0x38] sm:$0xff]
    %v83 = vld [vmem:[#allocation3] sm:$0xff]
    %v84 = vld [vmem:[#allocation3 + $0x8] sm:$0xff]
    %v85 = vld [vmem:[#allocation3 + $0x10] sm:$0xff]
    %v86 = vld [vmem:[#allocation3 + $0x18] sm:$0xff]
    %v87 = vld [vmem:[#allocation3 + $0x20] sm:$0xff]
    %v88 = vld [vmem:[#allocation3 + $0x28] sm:$0xff]
    %v89 = vld [vmem:[#allocation3 + $0x30] sm:$0xff]
    %v90 = vld [vmem:[#allocation3 + $0x38] sm:$0xff]
    %v91 = vld [vmem:[#allocation6] sm:$0xff]
    %v92 = vld [vmem:[#allocation6 + $0x8] sm:$0xff]
    %v93 = vld [vmem:[#allocation6 + $0x10] sm:$0xff]
    %v94 = vld [vmem:[#allocation6 + $0x18] sm:$0xff]
    %v95 = vld [vmem:[#allocation6 + $0x20] sm:$0xff]
    %v96 = vld [vmem:[#allocation6 + $0x28] sm:$0xff]
    %v97 = vld [vmem:[#allocation6 + $0x30] sm:$0xff]
    %v98 = vld [vmem:[#allocation6 + $0x38] sm:$0xff]
    %v99 = vmul.f32 %v83, %v91
    %v100 = vmul.f32 %v84, %v92
    %v101 = vmul.f32 %v85, %v93
    %v102 = vmul.f32 %v86, %v94
    %v103 = vmul.f32 %v87, %v95
    %v104 = vmul.f32 %v88, %v96
    %v105 = vmul.f32 %v89, %v97
    %v106 = vmul.f32 %v90, %v98
    %v107 = vadd.f32 %v83, %v91
    %v108 = vadd.f32 %v84, %v92
    %v109 = vadd.f32 %v85, %v93
    %v110 = vadd.f32 %v86, %v94
    %v111 = vadd.f32 %v87, %v95
    %v112 = vadd.f32 %v88, %v96
    %v113 = vadd.f32 %v89, %v97
    %v114 = vadd.f32 %v90, %v98
    %v115 = vadd.f32 %v66, %v99
    %v116 = vadd.f32 %v67, %v100
    %v117 = vadd.f32 %v68, %v101
    %v118 = vadd.f32 %v69, %v102
    %v119 = vadd.f32 %v70, %v103
    %v120 = vadd.f32 %v71, %v104
    %v121 = vadd.f32 %v72, %v105
    %v122 = vadd.f32 %v73, %v106
    %v123 = vadd.f32 %v75, %v107
    %v124 = vadd.f32 %v76, %v108
    %v125 = vadd.f32 %v77, %v109
    %v126 = vadd.f32 %v78, %v110
    %v127 = vadd.f32 %v79, %v111
    %v128 = vadd.f32 %v80, %v112
    %v129 = vadd.f32 %v81, %v113
    %v130 = vadd.f32 %v82, %v114
    %131 = vst [vmem:[#allocation2] sm:$0xff] %v115
    %132 = vst [vmem:[#allocation2 + $0x8] sm:$0xff] %v116
    %133 = vst [vmem:[#allocation2 + $0x10] sm:$0xff] %v117
    %134 = vst [vmem:[#allocation2 + $0x18] sm:$0xff] %v118
    %135 = vst [vmem:[#allocation2 + $0x20] sm:$0xff] %v119
    %136 = vst [vmem:[#allocation2 + $0x28] sm:$0xff] %v120
    %137 = vst [vmem:[#allocation2 + $0x30] sm:$0xff] %v121
    %138 = vst [vmem:[#allocation2 + $0x38] sm:$0xff] %v122
    %139 = vst [vmem:[%s74] sm:$0xff] %v123
    %140 = vst [vmem:[%s74 + $0x8] sm:$0xff] %v124
    %141 = vst [vmem:[%s74 + $0x10] sm:$0xff] %v125
    %142 = vst [vmem:[%s74 + $0x18] sm:$0xff] %v126
    %143 = vst [vmem:[%s74 + $0x20] sm:$0xff] %v127
    %144 = vst [vmem:[%s74 + $0x28] sm:$0xff] %v128
    %145 = vst [vmem:[%s74 + $0x30] sm:$0xff] %v129
    %146 = vst [vmem:[%s74 + $0x38] sm:$0xff] %v130
    // Predicated region
    $region22: #{tpu_custom_call.1} parent=1 // pred_check
      %p147 = pneg %p46
    $region23: #{tpu_custom_call.1} parent=1 // pred_check_branch
      %149 = sbr.rel (%p147) target = $region25
    $region24: #{tpu_custom_call.1} parent=1 // pred_region
      %v150 = vld [vmem:[#allocation2] sm:$0xff]
      %v151 = vld [vmem:[#allocation2 + $0x8] sm:$0xff]
      %v152 = vld [vmem:[#allocation2 + $0x10] sm:$0xff]
      %v153 = vld [vmem:[#allocation2 + $0x18] sm:$0xff]
      %v154 = vld [vmem:[#allocation2 + $0x20] sm:$0xff]
      %v155 = vld [vmem:[#allocation2 + $0x28] sm:$0xff]
      %v156 = vld [vmem:[#allocation2 + $0x30] sm:$0xff]
      %v157 = vld [vmem:[#allocation2 + $0x38] sm:$0xff]
      %v158 = vld [vmem:[#allocation2 + $0x40] sm:$0xff]
      %v159 = vld [vmem:[#allocation2 + $0x48] sm:$0xff]
      %v160 = vld [vmem:[#allocation2 + $0x50] sm:$0xff]
      %v161 = vld [vmem:[#allocation2 + $0x58] sm:$0xff]
      %v162 = vld [vmem:[#allocation2 + $0x60] sm:$0xff]
      %v163 = vld [vmem:[#allocation2 + $0x68] sm:$0xff]
      %v164 = vld [vmem:[#allocation2 + $0x70] sm:$0xff]
      %v165 = vld [vmem:[#allocation2 + $0x78] sm:$0xff]
      %v166 = vadd.f32 %v150, %v151
      %v167 = vadd.f32 %v158, %v159
      %v168 = vadd.f32 %v166, %v152
      %v169 = vadd.f32 %v167, %v160
      %v170 = vadd.f32 %v168, %v153
      %v171 = vadd.f32 %v169, %v161
      %v172 = vadd.f32 %v170, %v154
      %v173 = vadd.f32 %v171, %v162
      %v174 = vadd.f32 %v172, %v155
      %v175 = vadd.f32 %v173, %v163
      %v176 = vadd.f32 %v174, %v156
      %v177 = vadd.f32 %v175, %v164
      %v178 = vadd.f32 %v176, %v157
      %v179 = vadd.f32 %v177, %v165
      %180 = vst [vmem:[#allocation8] sm:$0xff] %v178
      %181 = vst [vmem:[#allocation8 + $0x8] sm:$0xff] %v179
    $region25: #{tpu_custom_call.1} parent=1 // pred_fallthru
      _
    // Predicated region
    $region26: #{tpu_custom_call.1} parent=1 // pred_check
      _
    $region27: #{tpu_custom_call.1} parent=1 // pred_check_branch
      %183 = sbr.rel (0) target = $region29
    $region28: #{tpu_custom_call.1} parent=1 // pred_region
      %s185 = ssub.s32 256, 256
      %186 = vsyncadd [#allocation5], %s185
      %s187 = sshll.u32 [#allocation8], 4
      %s188 = int_to_ptr.vmem [resolvable:$true] %s187
      %193 = dma.vmem_to_hbm [thread:$0]  %s188, 256, %s2, [#allocation5], 128, 128, 8
    $region29: #{tpu_custom_call.1} parent=1 // pred_fallthru
      _
    // Predicated region
    $region30: #{tpu_custom_call.1} parent=1 // pred_check
      _
    $region31: #{tpu_custom_call.1} parent=1 // pred_check_branch
      %195 = sbr.rel (0) target = $region33
    $region32: #{tpu_custom_call.1} parent=1 // pred_region
      %196 = dma.done [#allocation5], 256
    $region33: #{tpu_custom_call.1} parent=1 // pred_fallthru
      _
    %197 = vsyncpa [#allocation4], 1
    %198 = vsyncpa [#allocation7], 1
    %199 = vsyncpa [#allocation5], 1

</llo_original>
